<compile_context>
chip_gen: v7x
topology: tpu7x:2x2x1
jax: 0.10.0
libtpu: 0.0.40
codegen_flags: <defaults>
</compile_context>

<pallas_src>
import jax
import jax.numpy as jnp
import numpy as np
from jax.experimental import pallas as pl
from jax.experimental.pallas import tpu as pltpu

K = 5         # Conv1d kernel size
PAD = 2       # 'same' padding
N_LAYERS = 4  # conv+ReLU layers


def _lane_roll(x, shift):
    """jnp.roll along the last (lane) axis with a *static* shift, written as
    two static lane slices + concat (always lowerable in Mosaic)."""
    n = x.shape[-1]
    shift %= n
    if shift == 0:
        return x
    return jnp.concatenate([x[..., n - shift:], x[..., :n - shift]], axis=-1)


def simpleconv_kernel(x_ref, w_ref, b_ref, o_ref):
    # x_ref: [Bblk, C, L]        (NCL tile: C on sublanes, L on lanes)
    # w_ref: [N_LAYERS, C, K*C]  bf16, w[l, co, k*C + ci] = W_torch[l, co, ci, k]
    # b_ref: [N_LAYERS, C, 1]    f32 (column -> broadcasts over length/lanes)
    # o_ref: [Bblk, C, L]
    bblk, C, L = x_ref.shape
    SEG = L + 2 * PAD            # per-batch zero-padded segment width (lanes)

    # Build the zero-padded activation slab [C, Bblk*SEG] as a value (vregs).
    zpad = jnp.zeros((C, PAD), jnp.float32)
    ones = jnp.ones((C, L), jnp.float32)
    pieces, mask_pieces = [], []
    for b in range(bblk):
        pieces += [zpad, x_ref[b].astype(jnp.float32), zpad]
        mask_pieces += [zpad, ones, zpad]
    slab = jnp.concatenate(pieces, axis=-1)         # [C, Bblk*SEG]
    valid = jnp.concatenate(mask_pieces, axis=-1)   # 1.0 on real cols, 0.0 pads

    for layer in range(N_LAYERS):
        # im2col: cols[k*C + ci, p] = slab[ci, p + k - PAD].
        # Wrapped columns of the roll only move zeros between pad columns,
        # and pad columns are re-masked to zero after every layer.
        cols = jnp.concatenate(
            [_lane_roll(slab, PAD - k) for k in range(K)], axis=0)  # [K*C, W]
        # Single fused MXU matmul per layer: bf16 operands, f32 accumulate.
        y = jnp.dot(w_ref[layer], cols.astype(jnp.bfloat16),
                    preferred_element_type=jnp.float32)             # [C, W]
        y = y + b_ref[layer]                 # bias [C, 1] broadcast over lanes
        y = jnp.maximum(y, 0.0)              # ReLU in f32 on the VPU (v5e-safe)
        slab = y * valid                     # keep pad columns exactly zero

    # Write back in the module's NCL layout.  Note: at L=16 the store's lane
    # dim is narrow (masked vst); for large L/B one would re-tile so the last
    # dim is a multiple of 128 — here removing wrapper transposes dominates.
    for b in range(bblk):
        s = b * SEG + PAD
        o_ref[b] = slab[:, s:s + L].astype(o_ref.dtype)


def _multi_tensorcore_chip() -> bool:
    """True on chips where a 'parallel' grid axis shards across multiple
    TensorCores (v7x: 2 TC/chip, v4/v5p megacore). v5e/v6e -> False."""
    try:
        kind = jax.devices()[0].device_kind.lower()
    except Exception:
        return False
    return any(tag in kind for tag in ("7x", "v7", "v4", "v5p"))


def simpleconv_forward(x_ncl, w_torch, bias):
    """x_ncl: [B, C, L] f32 (PyTorch Conv1d NCL). Returns [B, C, L] f32."""
    B, C, L = x_ncl.shape

    # Pre-flatten weights for the fused per-layer matmul:
    #   [layer, Cout, Cin, K] -> [layer, Cout, K*Cin] (bf16 MXU operands).
    w_flat = jnp.transpose(w_torch, (0, 1, 3, 2)).reshape(N_LAYERS, C, K * C)
    w_flat = w_flat.astype(jnp.bfloat16)
    # Bias as a [C, 1] column per layer (f32).
    b_col = bias.astype(jnp.float32).reshape(N_LAYERS, C, 1)

    # Grid strategy (perf review): per-batch parallel grid on multi-TC chips,
    # single collapsed invocation on single-TC chips.
    batch_block = 1 if (_multi_tensorcore_chip() and B > 1) else B
    grid = (B // batch_block,)

    return pl.pallas_call(
        simpleconv_kernel,
        out_shape=jax.ShapeDtypeStruct((B, C, L), jnp.float32),
        grid_spec=pltpu.PrefetchScalarGridSpec(
            num_scalar_prefetch=0,
            grid=grid,
            in_specs=[
                pl.BlockSpec((batch_block, C, L), lambda g: (g, 0, 0)),
                pl.BlockSpec((N_LAYERS, C, K * C), lambda g: (0, 0, 0)),
                pl.BlockSpec((N_LAYERS, C, 1), lambda g: (0, 0, 0)),
            ],
            out_specs=pl.BlockSpec((batch_block, C, L), lambda g: (g, 0, 0)),
        ),
        compiler_params=pltpu.CompilerParams(
            dimension_semantics=("parallel",)),
    )(x_ncl, w_flat, b_col)


def ref_forward(x_ncl, w_torch, bias):
    """Pure-JAX reference matching PyTorch Conv1d(k=5, s=1, p=2) + ReLU x4."""
    y = x_ncl
    for layer in range(N_LAYERS):
        y = jax.lax.conv_general_dilated(
            y, w_torch[layer], window_strides=(1,), padding=((PAD, PAD),),
            dimension_numbers=('NCW', 'OIW', 'NCW'))
        y = y + bias[layer][None, :, None]
        y = jnp.maximum(y, 0.0)
    return y


if __name__ == "__main__":
    B, C, L = 2, 8, 16   # channels=8 per module default; small sequence length

    key = jax.random.PRNGKey(0)
    kx, kw, kb = jax.random.split(key, 3)

    # Deterministic synthetic parameters (init_sequential_weights is synthetic).
    x = jax.random.normal(kx, (B, C, L), dtype=jnp.float32)            # [B, C, L]
    w = 0.1 * jax.random.normal(kw, (N_LAYERS, C, C, K), jnp.float32)  # [layer, Cout, Cin, K]
    b = 0.1 * jax.random.normal(kb, (N_LAYERS, C), jnp.float32)        # [layer, Cout]

    fwd = jax.jit(simpleconv_forward)   # one executable: weight repack + kernel
    out = jax.block_until_ready(fwd(x, w, b))

    ref = ref_forward(x, w, b)
    # Tolerance loosened vs 1e-5 because MXU operands are bf16 (f32 accumulate),
    # per the performance guidance.
    np.testing.assert_allclose(np.asarray(out), np.asarray(ref),
                               rtol=2e-2, atol=2e-2)
    print("KERNEL_OK")
</pallas_src>

<mosaic_0001>
module attributes {stable_mosaic.version = 11 : i64} {
  func.func @simpleconv_kernel(%arg0: i32, %arg1: memref<2x8x16xf32, #tpu.memory_space<vmem>>, %arg2: memref<4x8x40xbf16, #tpu.memory_space<vmem>>, %arg3: memref<4x8x1xf32, #tpu.memory_space<vmem>>, %arg4: memref<2x8x16xf32, #tpu.memory_space<vmem>>) attributes {dimension_semantics = [#tpu.dimension_semantics<parallel>], iteration_bounds = array<i64: 1>, scalar_prefetch = 0 : i64, scratch_operands = 0 : i64, tpu.core_type = #tpu.core_type<tc>, window_params = [{transform_indices = @transform_0, window_bounds = array<i64: 2, 8, 16>}, {pipeline_mode = #tpu.pipeline_mode<synchronous>, transform_indices = @transform_1, window_bounds = array<i64: 4, 8, 40>}, {pipeline_mode = #tpu.pipeline_mode<synchronous>, transform_indices = @transform_2, window_bounds = array<i64: 4, 8, 1>}, {transform_indices = @transform_3, window_bounds = array<i64: 2, 8, 16>}]} {
    %cst = arith.constant 0.000000e+00 : f32
    %0 = vector.broadcast %cst : f32 to vector<8x2xf32>
    %cst_0 = arith.constant 1.000000e+00 : f32
    %1 = vector.broadcast %cst_0 : f32 to vector<8x16xf32>
    %c0 = arith.constant 0 : index
    %c0_1 = arith.constant 0 : index
    %c0_2 = arith.constant 0 : index
    %2 = vector.load %arg1[%c0, %c0_1, %c0_2] : memref<2x8x16xf32, #tpu.memory_space<vmem>>, vector<1x8x16xf32>
    %3 = vector.shape_cast %2 : vector<1x8x16xf32> to vector<8x16xf32>
    %c1 = arith.constant 1 : index
    %c0_3 = arith.constant 0 : index
    %c0_4 = arith.constant 0 : index
    %4 = vector.load %arg1[%c1, %c0_3, %c0_4] : memref<2x8x16xf32, #tpu.memory_space<vmem>>, vector<1x8x16xf32>
    %5 = vector.shape_cast %4 : vector<1x8x16xf32> to vector<8x16xf32>
    %6 = tpu.concatenate %0, %3, %0, %0, %5, %0 in 1 : vector<8x2xf32>, vector<8x16xf32>, vector<8x2xf32>, vector<8x2xf32>, vector<8x16xf32>, vector<8x2xf32> -> vector<8x40xf32>
    %7 = tpu.concatenate %0, %1, %0, %0, %1, %0 in 1 : vector<8x2xf32>, vector<8x16xf32>, vector<8x2xf32>, vector<8x2xf32>, vector<8x16xf32>, vector<8x2xf32> -> vector<8x40xf32>
    %8 = vector.extract_strided_slice %6 {offsets = [0, 38], sizes = [8, 2], strides = [1, 1]} : vector<8x40xf32> to vector<8x2xf32>
    %9 = vector.extract_strided_slice %6 {offsets = [0, 0], sizes = [8, 38], strides = [1, 1]} : vector<8x40xf32> to vector<8x38xf32>
    %10 = tpu.concatenate %8, %9 in 1 : vector<8x2xf32>, vector<8x38xf32> -> vector<8x40xf32>
    %11 = vector.extract_strided_slice %6 {offsets = [0, 39], sizes = [8, 1], strides = [1, 1]} : vector<8x40xf32> to vector<8x1xf32>
    %12 = vector.extract_strided_slice %6 {offsets = [0, 0], sizes = [8, 39], strides = [1, 1]} : vector<8x40xf32> to vector<8x39xf32>
    %13 = tpu.concatenate %11, %12 in 1 : vector<8x1xf32>, vector<8x39xf32> -> vector<8x40xf32>
    %14 = vector.extract_strided_slice %6 {offsets = [0, 1], sizes = [8, 39], strides = [1, 1]} : vector<8x40xf32> to vector<8x39xf32>
    %15 = vector.extract_strided_slice %6 {offsets = [0, 0], sizes = [8, 1], strides = [1, 1]} : vector<8x40xf32> to vector<8x1xf32>
    %16 = tpu.concatenate %14, %15 in 1 : vector<8x39xf32>, vector<8x1xf32> -> vector<8x40xf32>
    %17 = vector.extract_strided_slice %6 {offsets = [0, 2], sizes = [8, 38], strides = [1, 1]} : vector<8x40xf32> to vector<8x38xf32>
    %18 = vector.extract_strided_slice %6 {offsets = [0, 0], sizes = [8, 2], strides = [1, 1]} : vector<8x40xf32> to vector<8x2xf32>
    %19 = tpu.concatenate %17, %18 in 1 : vector<8x38xf32>, vector<8x2xf32> -> vector<8x40xf32>
    %20 = tpu.concatenate %10, %13, %6, %16, %19 in 0 : vector<8x40xf32>, vector<8x40xf32>, vector<8x40xf32>, vector<8x40xf32>, vector<8x40xf32> -> vector<40x40xf32>
    %c0_5 = arith.constant 0 : index
    %c0_6 = arith.constant 0 : index
    %c0_7 = arith.constant 0 : index
    %21 = vector.load %arg2[%c0_5, %c0_6, %c0_7] : memref<4x8x40xbf16, #tpu.memory_space<vmem>>, vector<1x8x40xbf16>
    %22 = vector.shape_cast %21 : vector<1x8x40xbf16> to vector<8x40xbf16>
    %23 = arith.truncf %20 : vector<40x40xf32> to vector<40x40xbf16>
    %cst_8 = arith.constant dense<0.000000e+00> : vector<8x40xf32>
    %24 = tpu.matmul %22, %23, %cst_8 {dimension_numbers = #tpu.dot_dimension_numbers<[1], [0], [0], [1], [0, 0, 1, 1], [], []>} : vector<8x40xbf16>, vector<40x40xbf16>, vector<8x40xf32> -> vector<8x40xf32>
    %c0_9 = arith.constant 0 : index
    %c0_10 = arith.constant 0 : index
    %c0_11 = arith.constant 0 : index
    %25 = vector.load %arg3[%c0_9, %c0_10, %c0_11] : memref<4x8x1xf32, #tpu.memory_space<vmem>>, vector<1x8x1xf32>
    %26 = vector.shape_cast %25 : vector<1x8x1xf32> to vector<8x1xf32>
    %27 = vector.broadcast %26 : vector<8x1xf32> to vector<8x40xf32>
    %28 = arith.addf %24, %27 : vector<8x40xf32>
    %cst_12 = arith.constant 0.000000e+00 : f32
    %29 = vector.broadcast %cst_12 : f32 to vector<8x40xf32>
    %30 = arith.maximumf %28, %29 : vector<8x40xf32>
    %31 = arith.mulf %30, %7 : vector<8x40xf32>
    %32 = vector.extract_strided_slice %31 {offsets = [0, 38], sizes = [8, 2], strides = [1, 1]} : vector<8x40xf32> to vector<8x2xf32>
    %33 = vector.extract_strided_slice %31 {offsets = [0, 0], sizes = [8, 38], strides = [1, 1]} : vector<8x40xf32> to vector<8x38xf32>
    %34 = tpu.concatenate %32, %33 in 1 : vector<8x2xf32>, vector<8x38xf32> -> vector<8x40xf32>
    %35 = vector.extract_strided_slice %31 {offsets = [0, 39], sizes = [8, 1], strides = [1, 1]} : vector<8x40xf32> to vector<8x1xf32>
    %36 = vector.extract_strided_slice %31 {offsets = [0, 0], sizes = [8, 39], strides = [1, 1]} : vector<8x40xf32> to vector<8x39xf32>
    %37 = tpu.concatenate %35, %36 in 1 : vector<8x1xf32>, vector<8x39xf32> -> vector<8x40xf32>
    %38 = vector.extract_strided_slice %31 {offsets = [0, 1], sizes = [8, 39], strides = [1, 1]} : vector<8x40xf32> to vector<8x39xf32>
    %39 = vector.extract_strided_slice %31 {offsets = [0, 0], sizes = [8, 1], strides = [1, 1]} : vector<8x40xf32> to vector<8x1xf32>
    %40 = tpu.concatenate %38, %39 in 1 : vector<8x39xf32>, vector<8x1xf32> -> vector<8x40xf32>
    %41 = vector.extract_strided_slice %31 {offsets = [0, 2], sizes = [8, 38], strides = [1, 1]} : vector<8x40xf32> to vector<8x38xf32>
    %42 = vector.extract_strided_slice %31 {offsets = [0, 0], sizes = [8, 2], strides = [1, 1]} : vector<8x40xf32> to vector<8x2xf32>
    %43 = tpu.concatenate %41, %42 in 1 : vector<8x38xf32>, vector<8x2xf32> -> vector<8x40xf32>
    %44 = tpu.concatenate %34, %37, %31, %40, %43 in 0 : vector<8x40xf32>, vector<8x40xf32>, vector<8x40xf32>, vector<8x40xf32>, vector<8x40xf32> -> vector<40x40xf32>
    %c1_13 = arith.constant 1 : index
    %c0_14 = arith.constant 0 : index
    %c0_15 = arith.constant 0 : index
    %45 = vector.load %arg2[%c1_13, %c0_14, %c0_15] : memref<4x8x40xbf16, #tpu.memory_space<vmem>>, vector<1x8x40xbf16>
    %46 = vector.shape_cast %45 : vector<1x8x40xbf16> to vector<8x40xbf16>
    %47 = arith.truncf %44 : vector<40x40xf32> to vector<40x40xbf16>
    %cst_16 = arith.constant dense<0.000000e+00> : vector<8x40xf32>
    %48 = tpu.matmul %46, %47, %cst_16 {dimension_numbers = #tpu.dot_dimension_numbers<[1], [0], [0], [1], [0, 0, 1, 1], [], []>} : vector<8x40xbf16>, vector<40x40xbf16>, vector<8x40xf32> -> vector<8x40xf32>
    %c1_17 = arith.constant 1 : index
    %c0_18 = arith.constant 0 : index
    %c0_19 = arith.constant 0 : index
    %49 = vector.load %arg3[%c1_17, %c0_18, %c0_19] : memref<4x8x1xf32, #tpu.memory_space<vmem>>, vector<1x8x1xf32>
    %50 = vector.shape_cast %49 : vector<1x8x1xf32> to vector<8x1xf32>
    %51 = vector.broadcast %50 : vector<8x1xf32> to vector<8x40xf32>
    %52 = arith.addf %48, %51 : vector<8x40xf32>
    %cst_20 = arith.constant 0.000000e+00 : f32
    %53 = vector.broadcast %cst_20 : f32 to vector<8x40xf32>
    %54 = arith.maximumf %52, %53 : vector<8x40xf32>
    %55 = arith.mulf %54, %7 : vector<8x40xf32>
    %56 = vector.extract_strided_slice %55 {offsets = [0, 38], sizes = [8, 2], strides = [1, 1]} : vector<8x40xf32> to vector<8x2xf32>
    %57 = vector.extract_strided_slice %55 {offsets = [0, 0], sizes = [8, 38], strides = [1, 1]} : vector<8x40xf32> to vector<8x38xf32>
    %58 = tpu.concatenate %56, %57 in 1 : vector<8x2xf32>, vector<8x38xf32> -> vector<8x40xf32>
    %59 = vector.extract_strided_slice %55 {offsets = [0, 39], sizes = [8, 1], strides = [1, 1]} : vector<8x40xf32> to vector<8x1xf32>
    %60 = vector.extract_strided_slice %55 {offsets = [0, 0], sizes = [8, 39], strides = [1, 1]} : vector<8x40xf32> to vector<8x39xf32>
    %61 = tpu.concatenate %59, %60 in 1 : vector<8x1xf32>, vector<8x39xf32> -> vector<8x40xf32>
    %62 = vector.extract_strided_slice %55 {offsets = [0, 1], sizes = [8, 39], strides = [1, 1]} : vector<8x40xf32> to vector<8x39xf32>
    %63 = vector.extract_strided_slice %55 {offsets = [0, 0], sizes = [8, 1], strides = [1, 1]} : vector<8x40xf32> to vector<8x1xf32>
    %64 = tpu.concatenate %62, %63 in 1 : vector<8x39xf32>, vector<8x1xf32> -> vector<8x40xf32>
    %65 = vector.extract_strided_slice %55 {offsets = [0, 2], sizes = [8, 38], strides = [1, 1]} : vector<8x40xf32> to vector<8x38xf32>
    %66 = vector.extract_strided_slice %55 {offsets = [0, 0], sizes = [8, 2], strides = [1, 1]} : vector<8x40xf32> to vector<8x2xf32>
    %67 = tpu.concatenate %65, %66 in 1 : vector<8x38xf32>, vector<8x2xf32> -> vector<8x40xf32>
    %68 = tpu.concatenate %58, %61, %55, %64, %67 in 0 : vector<8x40xf32>, vector<8x40xf32>, vector<8x40xf32>, vector<8x40xf32>, vector<8x40xf32> -> vector<40x40xf32>
    %c2 = arith.constant 2 : index
    %c0_21 = arith.constant 0 : index
    %c0_22 = arith.constant 0 : index
    %69 = vector.load %arg2[%c2, %c0_21, %c0_22] : memref<4x8x40xbf16, #tpu.memory_space<vmem>>, vector<1x8x40xbf16>
    %70 = vector.shape_cast %69 : vector<1x8x40xbf16> to vector<8x40xbf16>
    %71 = arith.truncf %68 : vector<40x40xf32> to vector<40x40xbf16>
    %cst_23 = arith.constant dense<0.000000e+00> : vector<8x40xf32>
    %72 = tpu.matmul %70, %71, %cst_23 {dimension_numbers = #tpu.dot_dimension_numbers<[1], [0], [0], [1], [0, 0, 1, 1], [], []>} : vector<8x40xbf16>, vector<40x40xbf16>, vector<8x40xf32> -> vector<8x40xf32>
    %c2_24 = arith.constant 2 : index
    %c0_25 = arith.constant 0 : index
    %c0_26 = arith.constant 0 : index
    %73 = vector.load %arg3[%c2_24, %c0_25, %c0_26] : memref<4x8x1xf32, #tpu.memory_space<vmem>>, vector<1x8x1xf32>
    %74 = vector.shape_cast %73 : vector<1x8x1xf32> to vector<8x1xf32>
    %75 = vector.broadcast %74 : vector<8x1xf32> to vector<8x40xf32>
    %76 = arith.addf %72, %75 : vector<8x40xf32>
    %cst_27 = arith.constant 0.000000e+00 : f32
    %77 = vector.broadcast %cst_27 : f32 to vector<8x40xf32>
    %78 = arith.maximumf %76, %77 : vector<8x40xf32>
    %79 = arith.mulf %78, %7 : vector<8x40xf32>
    %80 = vector.extract_strided_slice %79 {offsets = [0, 38], sizes = [8, 2], strides = [1, 1]} : vector<8x40xf32> to vector<8x2xf32>
    %81 = vector.extract_strided_slice %79 {offsets = [0, 0], sizes = [8, 38], strides = [1, 1]} : vector<8x40xf32> to vector<8x38xf32>
    %82 = tpu.concatenate %80, %81 in 1 : vector<8x2xf32>, vector<8x38xf32> -> vector<8x40xf32>
    %83 = vector.extract_strided_slice %79 {offsets = [0, 39], sizes = [8, 1], strides = [1, 1]} : vector<8x40xf32> to vector<8x1xf32>
    %84 = vector.extract_strided_slice %79 {offsets = [0, 0], sizes = [8, 39], strides = [1, 1]} : vector<8x40xf32> to vector<8x39xf32>
    %85 = tpu.concatenate %83, %84 in 1 : vector<8x1xf32>, vector<8x39xf32> -> vector<8x40xf32>
    %86 = vector.extract_strided_slice %79 {offsets = [0, 1], sizes = [8, 39], strides = [1, 1]} : vector<8x40xf32> to vector<8x39xf32>
    %87 = vector.extract_strided_slice %79 {offsets = [0, 0], sizes = [8, 1], strides = [1, 1]} : vector<8x40xf32> to vector<8x1xf32>
    %88 = tpu.concatenate %86, %87 in 1 : vector<8x39xf32>, vector<8x1xf32> -> vector<8x40xf32>
    %89 = vector.extract_strided_slice %79 {offsets = [0, 2], sizes = [8, 38], strides = [1, 1]} : vector<8x40xf32> to vector<8x38xf32>
    %90 = vector.extract_strided_slice %79 {offsets = [0, 0], sizes = [8, 2], strides = [1, 1]} : vector<8x40xf32> to vector<8x2xf32>
    %91 = tpu.concatenate %89, %90 in 1 : vector<8x38xf32>, vector<8x2xf32> -> vector<8x40xf32>
    %92 = tpu.concatenate %82, %85, %79, %88, %91 in 0 : vector<8x40xf32>, vector<8x40xf32>, vector<8x40xf32>, vector<8x40xf32>, vector<8x40xf32> -> vector<40x40xf32>
    %c3 = arith.constant 3 : index
    %c0_28 = arith.constant 0 : index
    %c0_29 = arith.constant 0 : index
    %93 = vector.load %arg2[%c3, %c0_28, %c0_29] : memref<4x8x40xbf16, #tpu.memory_space<vmem>>, vector<1x8x40xbf16>
    %94 = vector.shape_cast %93 : vector<1x8x40xbf16> to vector<8x40xbf16>
    %95 = arith.truncf %92 : vector<40x40xf32> to vector<40x40xbf16>
    %cst_30 = arith.constant dense<0.000000e+00> : vector<8x40xf32>
    %96 = tpu.matmul %94, %95, %cst_30 {dimension_numbers = #tpu.dot_dimension_numbers<[1], [0], [0], [1], [0, 0, 1, 1], [], []>} : vector<8x40xbf16>, vector<40x40xbf16>, vector<8x40xf32> -> vector<8x40xf32>
    %c3_31 = arith.constant 3 : index
    %c0_32 = arith.constant 0 : index
    %c0_33 = arith.constant 0 : index
    %97 = vector.load %arg3[%c3_31, %c0_32, %c0_33] : memref<4x8x1xf32, #tpu.memory_space<vmem>>, vector<1x8x1xf32>
    %98 = vector.shape_cast %97 : vector<1x8x1xf32> to vector<8x1xf32>
    %99 = vector.broadcast %98 : vector<8x1xf32> to vector<8x40xf32>
    %100 = arith.addf %96, %99 : vector<8x40xf32>
    %cst_34 = arith.constant 0.000000e+00 : f32
    %101 = vector.broadcast %cst_34 : f32 to vector<8x40xf32>
    %102 = arith.maximumf %100, %101 : vector<8x40xf32>
    %103 = arith.mulf %102, %7 : vector<8x40xf32>
    %104 = vector.extract_strided_slice %103 {offsets = [0, 2], sizes = [8, 16], strides = [1, 1]} : vector<8x40xf32> to vector<8x16xf32>
    %c0_35 = arith.constant 0 : index
    %c0_36 = arith.constant 0 : index
    %c0_37 = arith.constant 0 : index
    %105 = vector.load %arg4[%c0_35, %c0_36, %c0_37] : memref<2x8x16xf32, #tpu.memory_space<vmem>>, vector<1x8x16xf32>
    %106 = vector.shape_cast %105 : vector<1x8x16xf32> to vector<8x16xf32>
    %107 = vector.shape_cast %104 : vector<8x16xf32> to vector<1x8x16xf32>
    tpu.vector_store %arg4[%c0_35, %c0_36, %c0_37], %107 {strides = array<i32>} : memref<2x8x16xf32, #tpu.memory_space<vmem>>, vector<1x8x16xf32>,
    %108 = vector.extract_strided_slice %103 {offsets = [0, 22], sizes = [8, 16], strides = [1, 1]} : vector<8x40xf32> to vector<8x16xf32>
    %c1_38 = arith.constant 1 : index
    %c0_39 = arith.constant 0 : index
    %c0_40 = arith.constant 0 : index
    %109 = vector.load %arg4[%c1_38, %c0_39, %c0_40] : memref<2x8x16xf32, #tpu.memory_space<vmem>>, vector<1x8x16xf32>
    %110 = vector.shape_cast %109 : vector<1x8x16xf32> to vector<8x16xf32>
    %111 = vector.shape_cast %108 : vector<8x16xf32> to vector<1x8x16xf32>
    tpu.vector_store %arg4[%c1_38, %c0_39, %c0_40], %111 {strides = array<i32>} : memref<2x8x16xf32, #tpu.memory_space<vmem>>, vector<1x8x16xf32>,
    return
  }
  func.func @transform_0(%arg0: i32) -> (i32, i32, i32) {
    %c0_i32 = arith.constant 0 : i32
    %c0_i32_0 = arith.constant 0 : i32
    %c0_i32_1 = arith.constant 0 : i32
    return %arg0, %c0_i32, %c0_i32_0 : i32, i32, i32
  }
  func.func @transform_1(%arg0: i32) -> (i32, i32, i32) {
    %c0_i32 = arith.constant 0 : i32
    %c0_i32_0 = arith.constant 0 : i32
    %c0_i32_1 = arith.constant 0 : i32
    %c0_i32_2 = arith.constant 0 : i32
    return %c0_i32, %c0_i32_0, %c0_i32_1 : i32, i32, i32
  }
  func.func @transform_2(%arg0: i32) -> (i32, i32, i32) {
    %c0_i32 = arith.constant 0 : i32
    %c0_i32_0 = arith.constant 0 : i32
    %c0_i32_1 = arith.constant 0 : i32
    %c0_i32_2 = arith.constant 0 : i32
    return %c0_i32, %c0_i32_0, %c0_i32_1 : i32, i32, i32
  }
  func.func @transform_3(%arg0: i32) -> (i32, i32, i32) {
    %c0_i32 = arith.constant 0 : i32
    %c0_i32_0 = arith.constant 0 : i32
    %c0_i32_1 = arith.constant 0 : i32
    return %arg0, %c0_i32, %c0_i32_0 : i32, i32, i32
  }
}

</mosaic_0001>

<llo_original>
// kernel: simpleconv_forward.1
$region0: #{simpleconv_forward.1}
  #allocation0 [shape = 'u32[]', space=smem, size = 0x4, offset = 0x4, fixed_abs, tag = 'smem constant byte address 0x4 - core index']
  #allocation1 [shape = 'u32[144,128]{1,0:T(1,128)}', space=vmem, size = 0x12000, scoped, tag = 'internal scratch']
  %s0 = inlined_call_operand.vmem [shape: f32[2,8,16], index: 0, kind: input, shape index: {}]
  %s1 = inlined_call_operand.vmem [shape: bf16[4,8,40], index: 1, kind: input, shape index: {}]
  %s2 = inlined_call_operand.vmem [shape: f32[4,8,1], index: 2, kind: input, shape index: {}]
  %s3 = inlined_call_operand.hbm [shape: f32[2,8,16], index: 3, kind: output, shape index: {}]
  %s4 = sld [smem:[#allocation0]]
  $region22: #{simpleconv_forward.1} parent=0
    _
  %s6 = ssub.s32 1, %s4
  %s7 = scalar_select 0, %s6, %s4
  $region1: #{simpleconv_forward.1} parent=0
    #allocation2 [shape = 'u8[8192]{0}', space=vmem, size = 0x2000, scoped, tag = 'output window, operand 0, single buffered']
    #allocation3 [shape = 's32[1]{0}', space=sflag, size = 0x4, scoped, tag = 'scoped memory for simpleconv_forward.1']
    %8 = vsyncpa [#allocation3], 0
    // Predicated region
    $region2: #{simpleconv_forward.1} parent=1 // pred_check
      _
    $region3: #{simpleconv_forward.1} parent=1 // pred_check_branch
      %10 = sbr.rel (0) target = $region5
    $region4: #{simpleconv_forward.1} parent=1 // pred_region
      _
    $region5: #{simpleconv_forward.1} parent=1 // pred_fallthru
      _
    // Predicated region
    $region6: #{simpleconv_forward.1} parent=1 // pred_check
      _
    $region7: #{simpleconv_forward.1} parent=1 // pred_check_branch
      %12 = sbr.rel (0) target = $region9
    $region8: #{simpleconv_forward.1} parent=1 // pred_region
      _
    $region9: #{simpleconv_forward.1} parent=1 // pred_fallthru
      _
    // Predicated region
    $region10: #{simpleconv_forward.1} parent=1 // pred_check
      _
    $region11: #{simpleconv_forward.1} parent=1 // pred_check_branch
      %14 = sbr.rel (0) target = $region13
    $region12: #{simpleconv_forward.1} parent=1 // pred_region
      _
    $region13: #{simpleconv_forward.1} parent=1 // pred_fallthru
      _
    %v16 = vld [vmem:[%s0] sm:$0xff]
    %s17 = scalar_lea.vmem %s0, 8
    %v18 = vld [vmem:[%s17] sm:$0xff]
    %20 = vrot.lane.b32.xlu0 %v16, 2
    %v21 = vpop.permute.xlu0 %20
    %24 = vrot.lane.b32.xlu0 %v18, 22
    %v25 = vpop.permute.xlu0 %24
    %vm27 = vcmask 15360
    %v28 = vsel %vm27, 0.0, %v21
    %vm29 = vcmask 146432
    %v30 = vsel %vm29, %v28, 0.0
    %vm31 = vcmask 162816
    %v32 = vsel %vm31, %v30, 0.0
    %vm33 = vcmask 179200
    %v34 = vsel %vm33, %v32, %v25
    %vm35 = vcmask 310272
    %v36 = vsel %vm35, %v34, 0.0
    %v37 = vsel %vm27, 0.0, 1.0
    %v38 = vsel %vm29, %v37, 0.0
    %v39 = vsel %vm31, %v38, 0.0
    %v40 = vsel %vm33, %v39, 1.0
    %v41 = vsel %vm35, %v40, 0.0
    %43 = vrot.lane.b32.xlu0 %v36, 90
    %v44 = vpop.permute.xlu0 %43
    %46 = vrot.lane.b32.xlu0 %v36, 2
    %v47 = vpop.permute.xlu0 %46
    %v49 = vsel %vm27, %v44, %v47
    %50 = vrot.lane.b32.xlu0 %v36, 89
    %v51 = vpop.permute.xlu0 %50
    %53 = vrot.lane.b32.xlu0 %v36, 1
    %v54 = vpop.permute.xlu0 %53
    %vm56 = vcmask 7168
    %v57 = vsel %vm56, %v51, %v54
    %58 = vrot.lane.b32.xlu0 %v36, 127
    %v59 = vpop.permute.xlu0 %58
    %61 = vrot.lane.b32.xlu0 %v36, 39
    %v62 = vpop.permute.xlu0 %61
    %vm64 = vcmask 318464
    %v65 = vsel %vm64, %v59, %v62
    %66 = vrot.lane.b32.xlu0 %v36, 126
    %v67 = vpop.permute.xlu0 %66
    %69 = vrot.lane.b32.xlu0 %v36, 38
    %v70 = vpop.permute.xlu0 %69
    %v72 = vsel %vm35, %v67, %v70
    %v73 = vld [vmem:[%s1] sm:$0xf]
    %v74 = vpack.c.bf16 %v57, %v49
    %v75 = vpack.c.bf16 %v65, %v36
    %v76 = vpack.c.bf16 %v72, %v72
    %v77 = vld [vmem:[%s2] sm:$0xff]
    %79 = vset.pattern.permute.xlu0 0
    %80 = vperm.xlu0 %79, %v77
    %v81 = vpop.permute.xlu0 %80
    %vm83 = vcmask 326656
    %v85 = vsel %vm83, %v73, 0
    %vm87 = vcmask 1043456
    %v89 = vsel %vm87, %v76, 0
    %91 = vmatprep.subr.bf16.mxu0 0
    %92 = vmatpush1.bf16.msra.mxu0 %v74
    %93 = vmatprep.subr.bf16.mxu0 0
    %94 = vmatpush1.bf16.msra.mxu0 %v75
    %95 = vmatprep.subr.bf16.mxu0 0
    %96 = vmatpush1.bf16.msra.mxu0 %v89
    %97 = vmatprep.subr.bf16.mxu0 0
    %98 = vmatpush1.bf16.msra.mxu0 0
    %99 = vmatprep.subr.bf16.mxu0 0
    %100 = vmatpush1.bf16.msra.mxu0 0
    %101 = vmatprep.subr.bf16.mxu0 0
    %102 = vmatpush1.bf16.msra.mxu0 0
    %103 = vmatprep.subr.bf16.mxu0 0
    %104 = vmatpush1.bf16.msra.mxu0 0
    %105 = vmatprep.subr.bf16.mxu0 0
    %106 = vmatpush1.bf16.msra.mxu0 0
    %107 = vmatprep.subr.bf16.mxu0 0
    %108 = vmatpush1.bf16.msra.mxu0 0
    %109 = vmatprep.subr.bf16.mxu0 0
    %110 = vmatpush1.bf16.msra.mxu0 0
    %111 = vmatprep.subr.bf16.mxu0 0
    %112 = vmatpush1.bf16.msra.mxu0 0
    %113 = vmatprep.subr.bf16.mxu0 0
    %114 = vmatpush1.bf16.msra.mxu0 0
    %115 = vmatprep.subr.bf16.mxu0 0
    %116 = vmatpush1.bf16.msra.mxu0 0
    %117 = vmatprep.subr.bf16.mxu0 0
    %118 = vmatpush1.bf16.msra.mxu0 0
    %119 = vmatprep.subr.bf16.mxu0 0
    %120 = vmatpush1.bf16.msra.mxu0 0
    %121 = vmatprep.subr.bf16.mxu0 0
    %122 = vmatpush1.bf16.msra.mxu0 0
    %123 = vmatprep.mubr.bf16.mxu0 0
    %124 = vmatmul.mubr.bf16.gmra.mrb[0].mxu0 %v85
    %v125 = vpop.f32.mrb[0].mxu0
    %v126 = vadd.f32 %v81, %v125
    %v127 = vpop.f32.mrb[0].mxu0
    %v128 = vpop.f32.mrb[0].mxu0
    %v129 = vpop.f32.mrb[0].mxu0
    %130 = vdwg.mxu0
    %v131 = vmax.f32 %v126, 0.0
    %v132 = vmul.f32 %v131, %v41
    %134 = vrot.lane.b32.xlu0 %v132, 90
    %v135 = vpop.permute.xlu0 %134
    %137 = vrot.lane.b32.xlu0 %v132, 2
    %v138 = vpop.permute.xlu0 %137
    %v140 = vsel %vm27, %v135, %v138
    %141 = vrot.lane.b32.xlu0 %v132, 89
    %v142 = vpop.permute.xlu0 %141
    %144 = vrot.lane.b32.xlu0 %v132, 1
    %v145 = vpop.permute.xlu0 %144
    %v147 = vsel %vm56, %v142, %v145
    %148 = vrot.lane.b32.xlu0 %v132, 127
    %v149 = vpop.permute.xlu0 %148
    %151 = vrot.lane.b32.xlu0 %v132, 39
    %v152 = vpop.permute.xlu0 %151
    %v154 = vsel %vm64, %v149, %v152
    %155 = vrot.lane.b32.xlu0 %v132, 126
    %v156 = vpop.permute.xlu0 %155
    %158 = vrot.lane.b32.xlu0 %v132, 38
    %v159 = vpop.permute.xlu0 %158
    %v161 = vsel %vm35, %v156, %v159
    %s162 = scalar_lea.vmem %s1, 4
    %v163 = vld [vmem:[%s162] sm:$0xf]
    %v164 = vpack.c.bf16 %v147, %v140
    %v165 = vpack.c.bf16 %v154, %v132
    %v166 = vpack.c.bf16 %v161, %v161
    %s167 = scalar_lea.vmem %s2, 8
    %v168 = vld [vmem:[%s167] sm:$0xff]
    %170 = vset.pattern.permute.xlu0 0
    %171 = vperm.xlu0 %170, %v168
    %v172 = vpop.permute.xlu0 %171
    %v175 = vsel %vm83, %v163, 0
    %v178 = vsel %vm87, %v166, 0
    %180 = vmatprep.subr.bf16.mxu0 0
    %181 = vmatpush1.bf16.msra.mxu0 %v164
    %182 = vmatprep.subr.bf16.mxu0 0
    %183 = vmatpush1.bf16.msra.mxu0 %v165
    %184 = vmatprep.subr.bf16.mxu0 0
    %185 = vmatpush1.bf16.msra.mxu0 %v178
    %186 = vmatprep.subr.bf16.mxu0 0
    %187 = vmatpush1.bf16.msra.mxu0 0
    %188 = vmatprep.subr.bf16.mxu0 0
    %189 = vmatpush1.bf16.msra.mxu0 0
    %190 = vmatprep.subr.bf16.mxu0 0
    %191 = vmatpush1.bf16.msra.mxu0 0
    %192 = vmatprep.subr.bf16.mxu0 0
    %193 = vmatpush1.bf16.msra.mxu0 0
    %194 = vmatprep.subr.bf16.mxu0 0
    %195 = vmatpush1.bf16.msra.mxu0 0
    %196 = vmatprep.subr.bf16.mxu0 0
    %197 = vmatpush1.bf16.msra.mxu0 0
    %198 = vmatprep.subr.bf16.mxu0 0
    %199 = vmatpush1.bf16.msra.mxu0 0
    %200 = vmatprep.subr.bf16.mxu0 0
    %201 = vmatpush1.bf16.msra.mxu0 0
    %202 = vmatprep.subr.bf16.mxu0 0
    %203 = vmatpush1.bf16.msra.mxu0 0
    %204 = vmatprep.subr.bf16.mxu0 0
    %205 = vmatpush1.bf16.msra.mxu0 0
    %206 = vmatprep.subr.bf16.mxu0 0
    %207 = vmatpush1.bf16.msra.mxu0 0
    %208 = vmatprep.subr.bf16.mxu0 0
    %209 = vmatpush1.bf16.msra.mxu0 0
    %210 = vmatprep.subr.bf16.mxu0 0
    %211 = vmatpush1.bf16.msra.mxu0 0
    %212 = vmatprep.mubr.bf16.mxu0 0
    %213 = vmatmul.mubr.bf16.gmra.mrb[0].mxu0 %v175
    %v214 = vpop.f32.mrb[0].mxu0
    %v215 = vadd.f32 %v172, %v214
    %v216 = vpop.f32.mrb[0].mxu0
    %v217 = vpop.f32.mrb[0].mxu0
    %v218 = vpop.f32.mrb[0].mxu0
    %219 = vdwg.mxu0
    %v220 = vmax.f32 %v215, 0.0
    %v221 = vmul.f32 %v220, %v41
    %223 = vrot.lane.b32.xlu0 %v221, 90
    %v224 = vpop.permute.xlu0 %223
    %226 = vrot.lane.b32.xlu0 %v221, 2
    %v227 = vpop.permute.xlu0 %226
    %v229 = vsel %vm27, %v224, %v227
    %230 = vrot.lane.b32.xlu0 %v221, 89
    %v231 = vpop.permute.xlu0 %230
    %233 = vrot.lane.b32.xlu0 %v221, 1
    %v234 = vpop.permute.xlu0 %233
    %v236 = vsel %vm56, %v231, %v234
    %237 = vrot.lane.b32.xlu0 %v221, 127
    %v238 = vpop.permute.xlu0 %237
    %240 = vrot.lane.b32.xlu0 %v221, 39
    %v241 = vpop.permute.xlu0 %240
    %v243 = vsel %vm64, %v238, %v241
    %244 = vrot.lane.b32.xlu0 %v221, 126
    %v245 = vpop.permute.xlu0 %244
    %247 = vrot.lane.b32.xlu0 %v221, 38
    %v248 = vpop.permute.xlu0 %247
    %v250 = vsel %vm35, %v245, %v248
    %s251 = scalar_lea.vmem %s1, 8
    %v252 = vld [vmem:[%s251] sm:$0xf]
    %v253 = vpack.c.bf16 %v236, %v229
    %v254 = vpack.c.bf16 %v243, %v221
    %v255 = vpack.c.bf16 %v250, %v250
    %s256 = scalar_lea.vmem %s2, 16
    %v257 = vld [vmem:[%s256] sm:$0xff]
    %259 = vset.pattern.permute.xlu0 0
    %260 = vperm.xlu0 %259, %v257
    %v261 = vpop.permute.xlu0 %260
    %v264 = vsel %vm83, %v252, 0
    %v267 = vsel %vm87, %v255, 0
    %269 = vmatprep.subr.bf16.mxu0 0
    %270 = vmatpush1.bf16.msra.mxu0 %v253
    %271 = vmatprep.subr.bf16.mxu0 0
    %272 = vmatpush1.bf16.msra.mxu0 %v254
    %273 = vmatprep.subr.bf16.mxu0 0
    %274 = vmatpush1.bf16.msra.mxu0 %v267
    %275 = vmatprep.subr.bf16.mxu0 0
    %276 = vmatpush1.bf16.msra.mxu0 0
    %277 = vmatprep.subr.bf16.mxu0 0
    %278 = vmatpush1.bf16.msra.mxu0 0
    %279 = vmatprep.subr.bf16.mxu0 0
    %280 = vmatpush1.bf16.msra.mxu0 0
    %281 = vmatprep.subr.bf16.mxu0 0
    %282 = vmatpush1.bf16.msra.mxu0 0
    %283 = vmatprep.subr.bf16.mxu0 0
    %284 = vmatpush1.bf16.msra.mxu0 0
    %285 = vmatprep.subr.bf16.mxu0 0
    %286 = vmatpush1.bf16.msra.mxu0 0
    %287 = vmatprep.subr.bf16.mxu0 0
    %288 = vmatpush1.bf16.msra.mxu0 0
    %289 = vmatprep.subr.bf16.mxu0 0
    %290 = vmatpush1.bf16.msra.mxu0 0
    %291 = vmatprep.subr.bf16.mxu0 0
    %292 = vmatpush1.bf16.msra.mxu0 0
    %293 = vmatprep.subr.bf16.mxu0 0
    %294 = vmatpush1.bf16.msra.mxu0 0
    %295 = vmatprep.subr.bf16.mxu0 0
    %296 = vmatpush1.bf16.msra.mxu0 0
    %297 = vmatprep.subr.bf16.mxu0 0
    %298 = vmatpush1.bf16.msra.mxu0 0
    %299 = vmatprep.subr.bf16.mxu0 0
    %300 = vmatpush1.bf16.msra.mxu0 0
    %301 = vmatprep.mubr.bf16.mxu0 0
    %302 = vmatmul.mubr.bf16.gmra.mrb[0].mxu0 %v264
    %v303 = vpop.f32.mrb[0].mxu0
    %v304 = vadd.f32 %v261, %v303
    %v305 = vpop.f32.mrb[0].mxu0
    %v306 = vpop.f32.mrb[0].mxu0
    %v307 = vpop.f32.mrb[0].mxu0
    %308 = vdwg.mxu0
    %v309 = vmax.f32 %v304, 0.0
    %v310 = vmul.f32 %v309, %v41
    %312 = vrot.lane.b32.xlu0 %v310, 90
    %v313 = vpop.permute.xlu0 %312
    %315 = vrot.lane.b32.xlu0 %v310, 2
    %v316 = vpop.permute.xlu0 %315
    %v318 = vsel %vm27, %v313, %v316
    %319 = vrot.lane.b32.xlu0 %v310, 89
    %v320 = vpop.permute.xlu0 %319
    %322 = vrot.lane.b32.xlu0 %v310, 1
    %v323 = vpop.permute.xlu0 %322
    %v325 = vsel %vm56, %v320, %v323
    %326 = vrot.lane.b32.xlu0 %v310, 127
    %v327 = vpop.permute.xlu0 %326
    %329 = vrot.lane.b32.xlu0 %v310, 39
    %v330 = vpop.permute.xlu0 %329
    %v332 = vsel %vm64, %v327, %v330
    %333 = vrot.lane.b32.xlu0 %v310, 126
    %v334 = vpop.permute.xlu0 %333
    %336 = vrot.lane.b32.xlu0 %v310, 38
    %v337 = vpop.permute.xlu0 %336
    %v339 = vsel %vm35, %v334, %v337
    %s340 = scalar_lea.vmem %s1, 12
    %v341 = vld [vmem:[%s340] sm:$0xf]
    %v342 = vpack.c.bf16 %v325, %v318
    %v343 = vpack.c.bf16 %v332, %v310
    %v344 = vpack.c.bf16 %v339, %v339
    %s345 = scalar_lea.vmem %s2, 24
    %v346 = vld [vmem:[%s345] sm:$0xff]
    %348 = vset.pattern.permute.xlu0 0
    %349 = vperm.xlu0 %348, %v346
    %v350 = vpop.permute.xlu0 %349
    %v353 = vsel %vm83, %v341, 0
    %v356 = vsel %vm87, %v344, 0
    %358 = vmatprep.subr.bf16.mxu0 0
    %359 = vmatpush1.bf16.msra.mxu0 %v342
    %360 = vmatprep.subr.bf16.mxu0 0
    %361 = vmatpush1.bf16.msra.mxu0 %v343
    %362 = vmatprep.subr.bf16.mxu0 0
    %363 = vmatpush1.bf16.msra.mxu0 %v356
    %364 = vmatprep.subr.bf16.mxu0 0
    %365 = vmatpush1.bf16.msra.mxu0 0
    %366 = vmatprep.subr.bf16.mxu0 0
    %367 = vmatpush1.bf16.msra.mxu0 0
    %368 = vmatprep.subr.bf16.mxu0 0
    %369 = vmatpush1.bf16.msra.mxu0 0
    %370 = vmatprep.subr.bf16.mxu0 0
    %371 = vmatpush1.bf16.msra.mxu0 0
    %372 = vmatprep.subr.bf16.mxu0 0
    %373 = vmatpush1.bf16.msra.mxu0 0
    %374 = vmatprep.subr.bf16.mxu0 0
    %375 = vmatpush1.bf16.msra.mxu0 0
    %376 = vmatprep.subr.bf16.mxu0 0
    %377 = vmatpush1.bf16.msra.mxu0 0
    %378 = vmatprep.subr.bf16.mxu0 0
    %379 = vmatpush1.bf16.msra.mxu0 0
    %380 = vmatprep.subr.bf16.mxu0 0
    %381 = vmatpush1.bf16.msra.mxu0 0
    %382 = vmatprep.subr.bf16.mxu0 0
    %383 = vmatpush1.bf16.msra.mxu0 0
    %384 = vmatprep.subr.bf16.mxu0 0
    %385 = vmatpush1.bf16.msra.mxu0 0
    %386 = vmatprep.subr.bf16.mxu0 0
    %387 = vmatpush1.bf16.msra.mxu0 0
    %388 = vmatprep.subr.bf16.mxu0 0
    %389 = vmatpush1.bf16.msra.mxu0 0
    %390 = vmatprep.mubr.bf16.mxu0 0
    %391 = vmatmul.mubr.bf16.gmra.mrb[0].mxu0 %v353
    %v392 = vpop.f32.mrb[0].mxu0
    %v393 = vadd.f32 %v350, %v392
    %v394 = vpop.f32.mrb[0].mxu0
    %v395 = vpop.f32.mrb[0].mxu0
    %v396 = vpop.f32.mrb[0].mxu0
    %397 = vdwg.mxu0
    %v398 = vmax.f32 %v393, 0.0
    %v399 = vmul.f32 %v398, %v41
    %401 = vrot.lane.b32.xlu0 %v399, 126
    %v402 = vpop.permute.xlu0 %401
    %vm404 = vcmask 130048
    %405 = vst.msk [vmem:[#allocation2] sm:$0xff] %vm404, %v402
    %406 = vrot.lane.b32.xlu0 %v399, 106
    %v407 = vpop.permute.xlu0 %406
    %s409 = scalar_lea.vmem [#allocation2], 8
    %410 = vst.msk [vmem:[%s409] sm:$0xff] %vm404, %v407
    // Predicated region
    $region14: #{simpleconv_forward.1} parent=1 // pred_check
      _
    $region15: #{simpleconv_forward.1} parent=1 // pred_check_branch
      %412 = sbr.rel (0) target = $region17
    $region16: #{simpleconv_forward.1} parent=1 // pred_region
      %s414 = ssub.s32 256, 256
      %415 = vsyncadd [#allocation3], %s414
      %s416 = sshll.u32 [#allocation2], 4
      %s417 = int_to_ptr.vmem [resolvable:$true] %s416
      %422 = dma.vmem_to_hbm [thread:$0]  %s417, 256, %s3, [#allocation3], 128, 128, 8
    $region17: #{simpleconv_forward.1} parent=1 // pred_fallthru
      _
    // Predicated region
    $region18: #{simpleconv_forward.1} parent=1 // pred_check
      _
    $region19: #{simpleconv_forward.1} parent=1 // pred_check_branch
      %424 = sbr.rel (0) target = $region21
    $region20: #{simpleconv_forward.1} parent=1 // pred_region
      %425 = dma.done [#allocation3], 256
    $region21: #{simpleconv_forward.1} parent=1 // pred_fallthru
      _
    %426 = vsyncpa [#allocation3], 1

</llo_original>
